<compile_context>
chip_gen: v5e
topology: v5e:2x2
jax: 0.10.0
libtpu: 0.0.40
codegen_flags: <defaults>
</compile_context>

<pallas_src>
import jax
import jax.numpy as jnp
from jax.experimental import pallas as pl
from jax.experimental.pallas import tpu as pltpu

NUM_CLASSES = 10
STEM_CHANNELS = 64            # color_inplanes / brightness_inplanes = 64 in BaseModel
BN_EPS = 1e-5
LANE = 128                    # 64 color lanes + 64 brightness lanes
K_PACKED = 9 * 3 + 9 * 1      # 36 packed input channels (taps x channels)


# ----------------------------- Pallas kernel --------------------------------

def _make_fused_kernel(bb, rows_out):
    """One grid step = BB images: fused conv(3x3) + BN + ReLU + GAP + head."""
    inv_hw = 1.0 / float(rows_out)

    def kernel(x_ref, w_ref, bn_scale_ref, bn_shift_ref, fc_w_ref, fc_b_ref, o_ref):
        # Single fused MXU matmul covering both pathways and all 9 taps:
        #   [bb*rows_out, 36] bf16  x  [36, 128] bf16 (block-diagonal)  ->  f32
        conv = jnp.dot(x_ref[0], w_ref[...], preferred_element_type=jnp.float32)

        # eval-mode BatchNorm (folded) + ReLU on the VPU, both pathways at once
        feat = jnp.maximum(conv * bn_scale_ref[...] + bn_shift_ref[...], 0.0)

        # per-image global average pool: f32 cross-sublane reductions (XLU slot),
        # image b occupies rows [b*rows_out, (b+1)*rows_out) -> sublane-tile aligned slices
        pooled = jnp.concatenate(
            [jnp.sum(feat[b * rows_out:(b + 1) * rows_out, :], axis=0, keepdims=True)
             for b in range(bb)],
            axis=0) * inv_hw                                            # [bb, 128] f32

        # fused classifier head (bf16 MXU operands, f32 accumulate);
        # concat(color, brightness) is already the lane layout of `pooled`
        logits = (jnp.dot(pooled.astype(jnp.bfloat16), fc_w_ref[...],
                          preferred_element_type=jnp.float32)
                  + fc_b_ref[...])                                      # [bb, 128] f32
        o_ref[0] = logits

    return kernel


# ------------------------------ wrappers -------------------------------------

def _pack_inputs(color_input, brightness_input):
    """NCHW inputs -> lane-dense packed operand [B, H*W, 36] bf16 (9 taps x 4 channels)."""
    B, _, H, W = color_input.shape
    xc = jnp.transpose(color_input, (0, 2, 3, 1))                 # NHWC [B,H,W,3]
    xb = jnp.transpose(brightness_input, (0, 2, 3, 1))            # NHWC [B,H,W,1]
    xcp = jnp.pad(xc, ((0, 0), (1, 1), (1, 1), (0, 0)))
    xbp = jnp.pad(xb, ((0, 0), (1, 1), (1, 1), (0, 0)))
    taps = []
    for di in range(3):
        for dj in range(3):
            taps.append(xcp[:, di:di + H, dj:dj + W, :])          # color tap: 3 channels
    for di in range(3):
        for dj in range(3):
            taps.append(xbp[:, di:di + H, dj:dj + W, :])          # brightness tap: 1 channel
    packed = jnp.concatenate(taps, axis=-1)                       # [B,H,W,36]
    return packed.reshape(B, H * W, K_PACKED).astype(jnp.bfloat16)


def _pack_weights(params):
    """Block-diagonal [36, 128] weight: color -> lanes 0..63, brightness -> lanes 64..127."""
    wc = params["w_color"].reshape(27, STEM_CHANNELS)             # (kh,kw,cin) row-major
    wb = params["w_bright"].reshape(9, STEM_CHANNELS)
    w = jnp.zeros((K_PACKED, LANE), jnp.float32)
    w = w.at[:27, :STEM_CHANNELS].set(wc)
    w = w.at[27:, STEM_CHANNELS:].set(wb)
    return w.astype(jnp.bfloat16)


def fused_two_stream_forward(color_input, brightness_input, params):
    """color_input: [B,3,H,W], brightness_input: [B,1,H,W] (NCHW, like PyTorch)."""
    B, _, H, W = color_input.shape
    rows_out = H * W

    # --- batch blocking: amortize per-step overhead, bound VMEM, keep >=2 steps for v7x ---
    # per-image VMEM ~ rows_out * 128 lanes * (2 bf16 input bufs + 2 f32 temporaries)
    bytes_per_img = rows_out * LANE * (2 * 2 + 2 * 4)
    bb = max(1, min(8, (12 * 1024 * 1024) // max(bytes_per_img, 1)))
    if B >= 2:
        bb = min(bb, max(1, B // 2))       # grid length >= 2 -> both v7x TensorCores busy
    else:
        bb = 1
    num_blocks = -(-B // bb)
    B_pad = num_blocks * bb

    # --- packed, lane-dense inputs; rows pre-flattened per batch block (no in-kernel reshape)
    x = _pack_inputs(color_input, brightness_input)               # [B, rows_out, 36] bf16
    if B_pad != B:
        x = jnp.pad(x, ((0, B_pad - B), (0, 0), (0, 0)))
    x = x.reshape(num_blocks, bb * rows_out, K_PACKED)

    w_packed = _pack_weights(params)

    # eval-mode BN folding, independent stats per pathway, packed along the 128 lanes
    scale_c = params["bn_c_gamma"] * jax.lax.rsqrt(params["bn_c_var"] + BN_EPS)
    shift_c = params["bn_c_beta"] - params["bn_c_mean"] * scale_c
    scale_b = params["bn_b_gamma"] * jax.lax.rsqrt(params["bn_b_var"] + BN_EPS)
    shift_b = params["bn_b_beta"] - params["bn_b_mean"] * scale_b
    bn_scale = jnp.concatenate([scale_c, scale_b]).reshape(1, LANE).astype(jnp.float32)
    bn_shift = jnp.concatenate([shift_c, shift_b]).reshape(1, LANE).astype(jnp.float32)

    # classifier head, padded to a lane-dense 128-wide output (stripped below)
    fc_w_pad = (jnp.zeros((LANE, LANE), jnp.float32)
                .at[:, :NUM_CLASSES].set(params["fc_w"])).astype(jnp.bfloat16)
    fc_b_pad = jnp.zeros((1, LANE), jnp.float32).at[0, :NUM_CLASSES].set(params["fc_b"])

    logits_pad = pl.pallas_call(
        _make_fused_kernel(bb, rows_out),
        out_shape=jax.ShapeDtypeStruct((num_blocks, bb, LANE), jnp.float32),
        grid=(num_blocks,),
        in_specs=[
            pl.BlockSpec((1, bb * rows_out, K_PACKED), lambda i: (i, 0, 0)),  # packed images
            pl.BlockSpec((K_PACKED, LANE), lambda i: (0, 0)),                 # conv weights
            pl.BlockSpec((1, LANE), lambda i: (0, 0)),                        # bn scale
            pl.BlockSpec((1, LANE), lambda i: (0, 0)),                        # bn shift
            pl.BlockSpec((LANE, LANE), lambda i: (0, 0)),                     # fc weight
            pl.BlockSpec((1, LANE), lambda i: (0, 0)),                        # fc bias
        ],
        out_specs=pl.BlockSpec((1, bb, LANE), lambda i: (i, 0, 0)),
        compiler_params=pltpu.CompilerParams(
            dimension_semantics=("parallel",),       # megacore sharding on v7x
            vmem_limit_bytes=32 * 1024 * 1024),
    )(x, w_packed, bn_scale, bn_shift, fc_w_pad, fc_b_pad)

    return logits_pad.reshape(B_pad, LANE)[:B, :NUM_CLASSES]


forward = jax.jit(fused_two_stream_forward)


# ------------------------------ params / reference ---------------------------

def make_params(key):
    """Deterministic parameter init (shapes follow the BaseModel two-stream stem spec)."""
    ks = jax.random.split(key, 12)
    return {
        # conv weights stored as [kh, kw, Cin, Cout]
        "w_color": jax.random.normal(ks[0], (3, 3, 3, STEM_CHANNELS), jnp.float32) * 0.05,
        "w_bright": jax.random.normal(ks[1], (3, 3, 1, STEM_CHANNELS), jnp.float32) * 0.05,
        # independent BatchNorm per pathway (randomized running stats)
        "bn_c_gamma": 1.0 + 0.1 * jax.random.normal(ks[2], (STEM_CHANNELS,), jnp.float32),
        "bn_c_beta": 0.1 * jax.random.normal(ks[3], (STEM_CHANNELS,), jnp.float32),
        "bn_c_mean": 0.1 * jax.random.normal(ks[4], (STEM_CHANNELS,), jnp.float32),
        "bn_c_var": jax.random.uniform(ks[5], (STEM_CHANNELS,), jnp.float32, 0.5, 1.5),
        "bn_b_gamma": 1.0 + 0.1 * jax.random.normal(ks[6], (STEM_CHANNELS,), jnp.float32),
        "bn_b_beta": 0.1 * jax.random.normal(ks[7], (STEM_CHANNELS,), jnp.float32),
        "bn_b_mean": 0.1 * jax.random.normal(ks[8], (STEM_CHANNELS,), jnp.float32),
        "bn_b_var": jax.random.uniform(ks[9], (STEM_CHANNELS,), jnp.float32, 0.5, 1.5),
        # fusion head: Linear(2*64 -> num_classes)
        "fc_w": jax.random.normal(ks[10], (2 * STEM_CHANNELS, NUM_CLASSES), jnp.float32) * 0.05,
        "fc_b": jax.random.normal(ks[11], (NUM_CLASSES,), jnp.float32) * 0.01,
    }


def reference_forward(color_input, brightness_input, params):
    """Plain-JAX reference (same bf16 input/weight quantization as the kernel)."""
    def pathway(x_nchw, w, gamma, beta, mean, var):
        x = jnp.transpose(x_nchw, (0, 2, 3, 1)).astype(jnp.bfloat16).astype(jnp.float32)
        wf = w.astype(jnp.bfloat16).astype(jnp.float32)
        y = jax.lax.conv_general_dilated(
            x, wf, window_strides=(1, 1), padding="SAME",
            dimension_numbers=("NHWC", "HWIO", "NHWC"))
        scale = gamma * jax.lax.rsqrt(var + BN_EPS)
        y = jnp.maximum(y * scale + (beta - mean * scale), 0.0)
        return y.mean(axis=(1, 2))                                   # [B, 64]

    fc = pathway(color_input, params["w_color"], params["bn_c_gamma"],
                 params["bn_c_beta"], params["bn_c_mean"], params["bn_c_var"])
    fb = pathway(brightness_input, params["w_bright"], params["bn_b_gamma"],
                 params["bn_b_beta"], params["bn_b_mean"], params["bn_b_var"])
    fused = jnp.concatenate([fc, fb], axis=-1)                       # [B, 128]
    return fused @ params["fc_w"] + params["fc_b"][None, :]


# TODO(synk): compile/fit/predict/predict_proba/evaluate training utilities of BaseModel
# (optimizers, schedulers, DataLoaders, AMP/GradScaler) have no Pallas equivalent; only
# the forward pass is implemented.

if __name__ == "__main__":
    key = jax.random.PRNGKey(0)
    kc, kb = jax.random.split(key)
    color = jax.random.normal(kc, (2, 3, 16, 16), jnp.float32)       # NCHW
    brightness = jax.random.normal(kb, (2, 1, 16, 16), jnp.float32)  # NCHW

    params = make_params(jax.random.PRNGKey(42))

    logits = forward(color, brightness, params)
    jax.block_until_ready(logits)
    assert logits.shape == (2, NUM_CLASSES)
    assert bool(jnp.all(jnp.isfinite(logits)))

    ref = reference_forward(color, brightness, params)
    max_err = float(jnp.max(jnp.abs(logits - ref)))
    assert max_err < 1e-2, f"mismatch vs reference: {max_err}"
    print("KERNEL_OK")
</pallas_src>

<mosaic_0001>
module attributes {stable_mosaic.version = 11 : i64} {
  func.func @kernel(%arg0: i32, %arg1: memref<1x256x36xbf16, #tpu.memory_space<vmem>>, %arg2: memref<36x128xbf16, #tpu.memory_space<vmem>>, %arg3: memref<1x128xf32, #tpu.memory_space<vmem>>, %arg4: memref<1x128xf32, #tpu.memory_space<vmem>>, %arg5: memref<128x128xbf16, #tpu.memory_space<vmem>>, %arg6: memref<1x128xf32, #tpu.memory_space<vmem>>, %arg7: memref<1x1x128xf32, #tpu.memory_space<vmem>>) attributes {dimension_semantics = [#tpu.dimension_semantics<parallel>], iteration_bounds = array<i64: 2>, scalar_prefetch = 0 : i64, scratch_operands = 0 : i64, tpu.core_type = #tpu.core_type<tc>, window_params = [{transform_indices = @transform_0, window_bounds = array<i64: 1, 256, 36>}, {pipeline_mode = #tpu.pipeline_mode<synchronous>, transform_indices = @transform_1, window_bounds = array<i64: 36, 128>}, {pipeline_mode = #tpu.pipeline_mode<synchronous>, transform_indices = @transform_2, window_bounds = array<i64: 1, 128>}, {pipeline_mode = #tpu.pipeline_mode<synchronous>, transform_indices = @transform_3, window_bounds = array<i64: 1, 128>}, {pipeline_mode = #tpu.pipeline_mode<synchronous>, transform_indices = @transform_4, window_bounds = array<i64: 128, 128>}, {pipeline_mode = #tpu.pipeline_mode<synchronous>, transform_indices = @transform_5, window_bounds = array<i64: 1, 128>}, {transform_indices = @transform_6, window_bounds = array<i64: 1, 1, 128>}]} {
    %c0 = arith.constant 0 : index
    %c0_0 = arith.constant 0 : index
    %c0_1 = arith.constant 0 : index
    %0 = vector.load %arg1[%c0, %c0_0, %c0_1] : memref<1x256x36xbf16, #tpu.memory_space<vmem>>, vector<1x256x36xbf16>
    %1 = vector.shape_cast %0 : vector<1x256x36xbf16> to vector<256x36xbf16>
    %c0_2 = arith.constant 0 : index
    %c0_3 = arith.constant 0 : index
    %2 = vector.load %arg2[%c0_2, %c0_3] : memref<36x128xbf16, #tpu.memory_space<vmem>>, vector<36x128xbf16>
    %cst = arith.constant dense<0.000000e+00> : vector<256x128xf32>
    %3 = tpu.matmul %1, %2, %cst {dimension_numbers = #tpu.dot_dimension_numbers<[1], [0], [0], [1], [0, 0, 1, 1], [], []>} : vector<256x36xbf16>, vector<36x128xbf16>, vector<256x128xf32> -> vector<256x128xf32>
    %c0_4 = arith.constant 0 : index
    %c0_5 = arith.constant 0 : index
    %4 = vector.load %arg3[%c0_4, %c0_5] : memref<1x128xf32, #tpu.memory_space<vmem>>, vector<1x128xf32>
    %5 = vector.broadcast %4 : vector<1x128xf32> to vector<256x128xf32>
    %6 = arith.mulf %3, %5 : vector<256x128xf32>
    %c0_6 = arith.constant 0 : index
    %c0_7 = arith.constant 0 : index
    %7 = vector.load %arg4[%c0_6, %c0_7] : memref<1x128xf32, #tpu.memory_space<vmem>>, vector<1x128xf32>
    %8 = vector.broadcast %7 : vector<1x128xf32> to vector<256x128xf32>
    %9 = arith.addf %6, %8 : vector<256x128xf32>
    %cst_8 = arith.constant 0.000000e+00 : f32
    %10 = vector.broadcast %cst_8 : f32 to vector<256x128xf32>
    %11 = arith.maximumf %9, %10 : vector<256x128xf32>
    %cst_9 = arith.constant dense<0.000000e+00> : vector<128xf32>
    %12 = vector.multi_reduction <add>, %11, %cst_9 [0] : vector<256x128xf32> to vector<128xf32>
    %13 = vector.shape_cast %12 : vector<128xf32> to vector<1x128xf32>
    %cst_10 = arith.constant 3.906250e-03 : f32
    %14 = vector.broadcast %cst_10 : f32 to vector<1x128xf32>
    %15 = arith.mulf %13, %14 : vector<1x128xf32>
    %16 = arith.truncf %15 : vector<1x128xf32> to vector<1x128xbf16>
    %c0_11 = arith.constant 0 : index
    %c0_12 = arith.constant 0 : index
    %17 = vector.load %arg5[%c0_11, %c0_12] : memref<128x128xbf16, #tpu.memory_space<vmem>>, vector<128x128xbf16>
    %cst_13 = arith.constant dense<0.000000e+00> : vector<1x128xf32>
    %18 = tpu.matmul %16, %17, %cst_13 {dimension_numbers = #tpu.dot_dimension_numbers<[1], [0], [0], [1], [0, 0, 1, 1], [], []>} : vector<1x128xbf16>, vector<128x128xbf16>, vector<1x128xf32> -> vector<1x128xf32>
    %c0_14 = arith.constant 0 : index
    %c0_15 = arith.constant 0 : index
    %19 = vector.load %arg6[%c0_14, %c0_15] : memref<1x128xf32, #tpu.memory_space<vmem>>, vector<1x128xf32>
    %20 = arith.addf %18, %19 : vector<1x128xf32>
    %c0_16 = arith.constant 0 : index
    %c0_17 = arith.constant 0 : index
    %c0_18 = arith.constant 0 : index
    %21 = vector.load %arg7[%c0_16, %c0_17, %c0_18] : memref<1x1x128xf32, #tpu.memory_space<vmem>>, vector<1x1x128xf32>
    %22 = vector.shape_cast %21 : vector<1x1x128xf32> to vector<1x128xf32>
    %23 = vector.shape_cast %20 : vector<1x128xf32> to vector<1x1x128xf32>
    tpu.vector_store %arg7[%c0_16, %c0_17, %c0_18], %23 {strides = array<i32>} : memref<1x1x128xf32, #tpu.memory_space<vmem>>, vector<1x1x128xf32>,
    return
  }
  func.func @transform_0(%arg0: i32) -> (i32, i32, i32) {
    %c0_i32 = arith.constant 0 : i32
    %c0_i32_0 = arith.constant 0 : i32
    %c0_i32_1 = arith.constant 0 : i32
    return %arg0, %c0_i32, %c0_i32_0 : i32, i32, i32
  }
  func.func @transform_1(%arg0: i32) -> (i32, i32) {
    %c0_i32 = arith.constant 0 : i32
    %c0_i32_0 = arith.constant 0 : i32
    %c0_i32_1 = arith.constant 0 : i32
    return %c0_i32, %c0_i32_0 : i32, i32
  }
  func.func @transform_2(%arg0: i32) -> (i32, i32) {
    %c0_i32 = arith.constant 0 : i32
    %c0_i32_0 = arith.constant 0 : i32
    %c0_i32_1 = arith.constant 0 : i32
    return %c0_i32, %c0_i32_0 : i32, i32
  }
  func.func @transform_3(%arg0: i32) -> (i32, i32) {
    %c0_i32 = arith.constant 0 : i32
    %c0_i32_0 = arith.constant 0 : i32
    %c0_i32_1 = arith.constant 0 : i32
    return %c0_i32, %c0_i32_0 : i32, i32
  }
  func.func @transform_4(%arg0: i32) -> (i32, i32) {
    %c0_i32 = arith.constant 0 : i32
    %c0_i32_0 = arith.constant 0 : i32
    %c0_i32_1 = arith.constant 0 : i32
    return %c0_i32, %c0_i32_0 : i32, i32
  }
  func.func @transform_5(%arg0: i32) -> (i32, i32) {
    %c0_i32 = arith.constant 0 : i32
    %c0_i32_0 = arith.constant 0 : i32
    %c0_i32_1 = arith.constant 0 : i32
    return %c0_i32, %c0_i32_0 : i32, i32
  }
  func.func @transform_6(%arg0: i32) -> (i32, i32, i32) {
    %c0_i32 = arith.constant 0 : i32
    %c0_i32_0 = arith.constant 0 : i32
    %c0_i32_1 = arith.constant 0 : i32
    return %arg0, %c0_i32, %c0_i32_0 : i32, i32, i32
  }
}

</mosaic_0001>

<llo_original>
// kernel: fused_two_stream_forward.1
$region0: #{fused_two_stream_forward.1}
  #allocation0 [shape = 'u32[]', space=smem, size = 0x4, offset = 0x4, fixed_abs, tag = 'smem constant byte address 0x4 - core index']
  #allocation1 [shape = 'u32[72,128]{1,0:T(1,128)}', space=vmem, size = 0x9000, scoped, tag = 'internal scratch']
  %s0 = inlined_call_operand.vmem [shape: bf16[2,256,36], index: 0, kind: input, shape index: {}]
  %s1 = inlined_call_operand.vmem [shape: bf16[36,128], index: 1, kind: input, shape index: {}]
  %s2 = inlined_call_operand.vmem [shape: f32[1,128], index: 2, kind: input, shape index: {}]
  %s3 = inlined_call_operand.vmem [shape: f32[1,128], index: 3, kind: input, shape index: {}]
  %s4 = inlined_call_operand.vmem [shape: bf16[128,128], index: 4, kind: input, shape index: {}]
  %s5 = inlined_call_operand.vmem [shape: f32[1,128], index: 5, kind: input, shape index: {}]
  %s6 = inlined_call_operand.hbm [shape: f32[2,1,128], index: 6, kind: output, shape index: {}]
  %s7 = sld [smem:[#allocation0]]
  $region57: #{fused_two_stream_forward.1} parent=0
    _
  %s9 = ssub.s32 1, %s7
  %s10 = scalar_select 0, %s9, %s7
  $region1: #{fused_two_stream_forward.1} parent=0
    #allocation2 [shape = 'u8[1024]{0}', space=vmem, size = 0x400, scoped, tag = 'output window, operand 0']
    #allocation3 [shape = 's32[2]{0}', space=sflag, size = 0x8, scoped, tag = 'scoped memory for fused_two_stream_forward.1']
    %11 = vsyncpa [#allocation3], 0
    %s12 = scalar_lea.sflag [#allocation3], 1
    %13 = vsyncpa %s12, 0
    loop: start=0, step=1, limit=4
    $region2: #{fused_two_stream_forward.1} parent=1 // loop_pre_header
      _
    $region3: #{fused_two_stream_forward.1} parent=1 // loop_header
      %s15 = sphi 0, %s19
      %p16 = scmp.ge.s32.totalorder %s15, 4
      %s25 = sphi 0, %s27
      %s28 = sphi 0, %s25
      %s29 = sphi 0, %s28
      %s45 = sphi 0, %s29
      %s49 = sphi 0, %s49
      %s51 = sphi 0, %s49
      %s52 = sphi 0, %s51
      %s66 = sphi 0, %s52
      %s70 = sphi 0, %s70
      %s72 = sphi 0, %s70
      %s73 = sphi 0, %s72
      %s87 = sphi 0, %s73
      %s91 = sphi 0, %s91
      %s93 = sphi 0, %s91
      %s94 = sphi 0, %s93
      %s108 = sphi 0, %s94
      %s112 = sphi 0, %s112
      %s114 = sphi 0, %s112
      %s115 = sphi 0, %s114
      %s129 = sphi 0, %s115
      %s133 = sphi 0, %s133
      %s135 = sphi 0, %s133
      %s136 = sphi 0, %s135
      %s150 = sphi 0, %s136
      %s156 = sphi 0, %s158
      %s159 = sphi 0, %s156
      %s160 = sphi 0, %s159
      %s176 = sphi 0, %s160
    $region4: #{fused_two_stream_forward.1} parent=1 // loop_header_branch
      %18 = sbr.rel (%p16) target = $region8
    $region5: #{fused_two_stream_forward.1} parent=1 // loop_body
      %s20 = ssub.s32 %s15, 1
      %s21 = ssub.s32 %s15, 2
      %s22 = sadd.s32 %s15, 1
      %s23 = ssub.s32 %s15, %s22
      %p24 = scmp.eq.s32.totalorder %s23, 0
      %s26 = sadd.s32 %s25, 1
      %s27 = scalar_select %p24, %s25, %s26
      %p30 = pneg %p24
      %p31 = scmp.eq.s32.totalorder %s15, 1
      %p32 = por %p30, %p31
      %p33 = scmp.ne.s32.totalorder %s25, %s28
      %p34 = scmp.eq.s32.totalorder %s15, 0
      %p35 = por %p33, %p34
      %p36 = scmp.ne.s32.totalorder %s25, %s28
      %p37 = scmp.eq.s32.totalorder %s20, 1
      %p38 = por %p36, %p37
      %p39 = scmp.ne.s32.totalorder %s28, %s29
      %p40 = scmp.eq.s32.totalorder %s20, 0
      %p41 = por %p39, %p40
      %p42 = scmp.ne.s32.totalorder %s28, %s29
      %p43 = scmp.eq.s32.totalorder %s21, 1
      %p44 = por %p42, %p43
      %p46 = scmp.ne.s32.totalorder %s29, %s45
      %p47 = scmp.eq.s32.totalorder %s21, 0
      %p48 = por %p46, %p47
      %s50 = sadd.s32 %s49, 1
      %p53 = scmp.eq.s32.totalorder %s15, 1
      %p54 = scmp.ne.s32.totalorder %s49, %s51
      %p55 = scmp.eq.s32.totalorder %s15, 0
      %p56 = por %p54, %p55
      %p57 = scmp.ne.s32.totalorder %s49, %s51
      %p58 = scmp.eq.s32.totalorder %s20, 1
      %p59 = por %p57, %p58
      %p60 = scmp.ne.s32.totalorder %s51, %s52
      %p61 = scmp.eq.s32.totalorder %s20, 0
      %p62 = por %p60, %p61
      %p63 = scmp.ne.s32.totalorder %s51, %s52
      %p64 = scmp.eq.s32.totalorder %s21, 1
      %p65 = por %p63, %p64
      %p67 = scmp.ne.s32.totalorder %s52, %s66
      %p68 = scmp.eq.s32.totalorder %s21, 0
      %p69 = por %p67, %p68
      %s71 = sadd.s32 %s70, 1
      %p74 = scmp.eq.s32.totalorder %s15, 1
      %p75 = scmp.ne.s32.totalorder %s70, %s72
      %p76 = scmp.eq.s32.totalorder %s15, 0
      %p77 = por %p75, %p76
      %p78 = scmp.ne.s32.totalorder %s70, %s72
      %p79 = scmp.eq.s32.totalorder %s20, 1
      %p80 = por %p78, %p79
      %p81 = scmp.ne.s32.totalorder %s72, %s73
      %p82 = scmp.eq.s32.totalorder %s20, 0
      %p83 = por %p81, %p82
      %p84 = scmp.ne.s32.totalorder %s72, %s73
      %p85 = scmp.eq.s32.totalorder %s21, 1
      %p86 = por %p84, %p85
      %p88 = scmp.ne.s32.totalorder %s73, %s87
      %p89 = scmp.eq.s32.totalorder %s21, 0
      %p90 = por %p88, %p89
      %s92 = sadd.s32 %s91, 1
      %p95 = scmp.eq.s32.totalorder %s15, 1
      %p96 = scmp.ne.s32.totalorder %s91, %s93
      %p97 = scmp.eq.s32.totalorder %s15, 0
      %p98 = por %p96, %p97
      %p99 = scmp.ne.s32.totalorder %s91, %s93
      %p100 = scmp.eq.s32.totalorder %s20, 1
      %p101 = por %p99, %p100
      %p102 = scmp.ne.s32.totalorder %s93, %s94
      %p103 = scmp.eq.s32.totalorder %s20, 0
      %p104 = por %p102, %p103
      %p105 = scmp.ne.s32.totalorder %s93, %s94
      %p106 = scmp.eq.s32.totalorder %s21, 1
      %p107 = por %p105, %p106
      %p109 = scmp.ne.s32.totalorder %s94, %s108
      %p110 = scmp.eq.s32.totalorder %s21, 0
      %p111 = por %p109, %p110
      %s113 = sadd.s32 %s112, 1
      %p116 = scmp.eq.s32.totalorder %s15, 1
      %p117 = scmp.ne.s32.totalorder %s112, %s114
      %p118 = scmp.eq.s32.totalorder %s15, 0
      %p119 = por %p117, %p118
      %p120 = scmp.ne.s32.totalorder %s112, %s114
      %p121 = scmp.eq.s32.totalorder %s20, 1
      %p122 = por %p120, %p121
      %p123 = scmp.ne.s32.totalorder %s114, %s115
      %p124 = scmp.eq.s32.totalorder %s20, 0
      %p125 = por %p123, %p124
      %p126 = scmp.ne.s32.totalorder %s114, %s115
      %p127 = scmp.eq.s32.totalorder %s21, 1
      %p128 = por %p126, %p127
      %p130 = scmp.ne.s32.totalorder %s115, %s129
      %p131 = scmp.eq.s32.totalorder %s21, 0
      %p132 = por %p130, %p131
      %s134 = sadd.s32 %s133, 1
      %p137 = scmp.eq.s32.totalorder %s15, 1
      %p138 = scmp.ne.s32.totalorder %s133, %s135
      %p139 = scmp.eq.s32.totalorder %s15, 0
      %p140 = por %p138, %p139
      %p141 = scmp.ne.s32.totalorder %s133, %s135
      %p142 = scmp.eq.s32.totalorder %s20, 1
      %p143 = por %p141, %p142
      %p144 = scmp.ne.s32.totalorder %s135, %s136
      %p145 = scmp.eq.s32.totalorder %s20, 0
      %p146 = por %p144, %p145
      %p147 = scmp.ne.s32.totalorder %s135, %s136
      %p148 = scmp.eq.s32.totalorder %s21, 1
      %p149 = por %p147, %p148
      %p151 = scmp.ne.s32.totalorder %s136, %s150
      %p152 = scmp.eq.s32.totalorder %s21, 0
      %p153 = por %p151, %p152
      %s154 = ssub.s32 %s15, %s22
      %p155 = scmp.eq.s32.totalorder %s154, 0
      %s157 = sadd.s32 %s156, 1
      %s158 = scalar_select %p155, %s156, %s157
      %p161 = pneg %p155
      %p162 = scmp.eq.s32.totalorder %s15, 1
      %p163 = por %p161, %p162
      %p164 = scmp.ne.s32.totalorder %s156, %s159
      %p165 = scmp.eq.s32.totalorder %s15, 0
      %p166 = por %p164, %p165
      %p167 = scmp.ne.s32.totalorder %s156, %s159
      %p168 = scmp.eq.s32.totalorder %s20, 1
      %p169 = por %p167, %p168
      %p170 = scmp.ne.s32.totalorder %s159, %s160
      %p171 = scmp.eq.s32.totalorder %s20, 0
      %p172 = por %p170, %p171
      %p173 = scmp.ne.s32.totalorder %s159, %s160
      %p174 = scmp.eq.s32.totalorder %s21, 1
      %p175 = por %p173, %p174
      %p177 = scmp.ne.s32.totalorder %s160, %s176
      %p178 = scmp.eq.s32.totalorder %s21, 0
      %p179 = por %p177, %p178
      %p180 = scmp.le.s32.totalorder 1, %s15
      %p181 = scmp.lt.s32.totalorder %s15, 3
      %p182 = pnand %p180, %p181
      %p183 = pneg %p182
      // Predicated region
      $region9: #{fused_two_stream_forward.1} parent=5 // pred_check
        _
      $region10: #{fused_two_stream_forward.1} parent=5 // pred_check_branch
        %185 = sbr.rel (%p182) target = $region12
      $region11: #{fused_two_stream_forward.1} parent=5 // pred_region
        %s186 = ssub.s32 %s15, 1
        // Predicated region
        $region13: #{fused_two_stream_forward.1} parent=11 // pred_check
          %p187 = pneg %p62
        $region14: #{fused_two_stream_forward.1} parent=11 // pred_check_branch
          %189 = sbr.rel (%p187) target = $region16
        $region15: #{fused_two_stream_forward.1} parent=11 // pred_region
          _
        $region16: #{fused_two_stream_forward.1} parent=11 // pred_fallthru
          _
        // Predicated region
        $region17: #{fused_two_stream_forward.1} parent=11 // pred_check
          %p190 = pneg %p83
        $region18: #{fused_two_stream_forward.1} parent=11 // pred_check_branch
          %192 = sbr.rel (%p190) target = $region20
        $region19: #{fused_two_stream_forward.1} parent=11 // pred_region
          _
        $region20: #{fused_two_stream_forward.1} parent=11 // pred_fallthru
          _
        // Predicated region
        $region21: #{fused_two_stream_forward.1} parent=11 // pred_check
          %p193 = pneg %p104
        $region22: #{fused_two_stream_forward.1} parent=11 // pred_check_branch
          %195 = sbr.rel (%p193) target = $region24
        $region23: #{fused_two_stream_forward.1} parent=11 // pred_region
          _
        $region24: #{fused_two_stream_forward.1} parent=11 // pred_fallthru
          _
        // Predicated region
        $region25: #{fused_two_stream_forward.1} parent=11 // pred_check
          %p196 = pneg %p125
        $region26: #{fused_two_stream_forward.1} parent=11 // pred_check_branch
          %198 = sbr.rel (%p196) target = $region28
        $region27: #{fused_two_stream_forward.1} parent=11 // pred_region
          _
        $region28: #{fused_two_stream_forward.1} parent=11 // pred_fallthru
          _
        // Predicated region
        $region29: #{fused_two_stream_forward.1} parent=11 // pred_check
          %p199 = pneg %p146
        $region30: #{fused_two_stream_forward.1} parent=11 // pred_check_branch
          %201 = sbr.rel (%p199) target = $region32
        $region31: #{fused_two_stream_forward.1} parent=11 // pred_region
          _
        $region32: #{fused_two_stream_forward.1} parent=11 // pred_fallthru
          _
      $region12: #{fused_two_stream_forward.1} parent=5 // pred_fallthru
        _
      %p202 = scmp.lt.s32.totalorder %s15, 2
      // Predicated region
      $region33: #{fused_two_stream_forward.1} parent=5 // pred_check
        %p203 = pneg %p202
      $region34: #{fused_two_stream_forward.1} parent=5 // pred_check_branch
        %205 = sbr.rel (%p203) target = $region36
      $region35: #{fused_two_stream_forward.1} parent=5 // pred_region
        // Predicated region
        $region37: #{fused_two_stream_forward.1} parent=35 // pred_check
          %p206 = pneg %p35
        $region38: #{fused_two_stream_forward.1} parent=35 // pred_check_branch
          %208 = sbr.rel (%p206) target = $region40
        $region39: #{fused_two_stream_forward.1} parent=35 // pred_region
          %p209 = scmp.lt.s32.totalorder %s15, 1
          %s210 = scalar_select %p209, %s15, 1
          %s211 = smul.addr %s210, 32
          %s212 = smul.addr %s211, 4
          %s213 = scalar_lea.vmem %s0, %s212
        $region40: #{fused_two_stream_forward.1} parent=35 // pred_fallthru
          _
      $region36: #{fused_two_stream_forward.1} parent=5 // pred_fallthru
        _
      %p214 = scmp.le.s32.totalorder 1, %s15
      %p215 = scmp.lt.s32.totalorder %s15, 3
      %p216 = pnand %p214, %p215
      %p217 = pneg %p216
      // Predicated region
      $region41: #{fused_two_stream_forward.1} parent=5 // pred_check
        _
      $region42: #{fused_two_stream_forward.1} parent=5 // pred_check_branch
        %219 = sbr.rel (%p216) target = $region44
      $region43: #{fused_two_stream_forward.1} parent=5 // pred_region
        %s220 = ssub.s32 %s15, 1
        %p221 = scmp.lt.s32.totalorder %s20, 1
        %s222 = scalar_select %p221, %s20, 1
        %s223 = smul.addr %s222, 32
        %s224 = smul.addr %s223, 4
        %s225 = scalar_lea.vmem %s0, %s224
        %p226 = pneg %p41
        %p227 = pneg %p38
        %p228 = pneg %p62
        %p229 = pneg %p59
        %p230 = pneg %p83
        %p231 = pneg %p80
        %p232 = pneg %p104
        %p233 = pneg %p101
        %p234 = pneg %p125
        %p235 = pneg %p122
        %p236 = pneg %p146
        %p237 = pneg %p143
        %p238 = pneg %p172
        %p239 = pneg %p169
        %s240 = sand.u32 %s159, 1
        %s241 = scalar_lea.sflag [#allocation3], %s240
        %s242 = sand.u32 %s159, 1
        %s243 = scalar_lea.vmem [#allocation2], %s242
        %p244 = scmp.lt.s32.totalorder %s20, 1
        %s245 = scalar_select %p244, %s20, 1
        %s246 = smul.addr %s245, 32
        %s247 = smul.addr %s246, 4
        %s248 = scalar_lea.vmem %s0, %s247
        %v250 = vld [vmem:[%s248] sm:$0xf]
        %v251 = vld [vmem:[%s248 + $0x4] sm:$0xf]
        %v252 = vld [vmem:[%s248 + $0x8] sm:$0xf]
        %v253 = vld [vmem:[%s248 + $0xc] sm:$0xf]
        %v254 = vld [vmem:[%s248 + $0x10] sm:$0xf]
        %v255 = vld [vmem:[%s248 + $0x14] sm:$0xf]
        %v256 = vld [vmem:[%s248 + $0x18] sm:$0xf]
        %v257 = vld [vmem:[%s248 + $0x1c] sm:$0xf]
        %v258 = vld [vmem:[%s248 + $0x20] sm:$0xf]
        %v259 = vld [vmem:[%s248 + $0x24] sm:$0xf]
        %v260 = vld [vmem:[%s248 + $0x28] sm:$0xf]
        %v261 = vld [vmem:[%s248 + $0x2c] sm:$0xf]
        %v262 = vld [vmem:[%s248 + $0x30] sm:$0xf]
        %v263 = vld [vmem:[%s248 + $0x34] sm:$0xf]
        %v264 = vld [vmem:[%s248 + $0x38] sm:$0xf]
        %v265 = vld [vmem:[%s248 + $0x3c] sm:$0xf]
        %v266 = vld [vmem:[%s248 + $0x40] sm:$0xf]
        %v267 = vld [vmem:[%s248 + $0x44] sm:$0xf]
        %v268 = vld [vmem:[%s248 + $0x48] sm:$0xf]
        %v269 = vld [vmem:[%s248 + $0x4c] sm:$0xf]
        %v270 = vld [vmem:[%s248 + $0x50] sm:$0xf]
        %v271 = vld [vmem:[%s248 + $0x54] sm:$0xf]
        %v272 = vld [vmem:[%s248 + $0x58] sm:$0xf]
        %v273 = vld [vmem:[%s248 + $0x5c] sm:$0xf]
        %v274 = vld [vmem:[%s248 + $0x60] sm:$0xf]
        %v275 = vld [vmem:[%s248 + $0x64] sm:$0xf]
        %v276 = vld [vmem:[%s248 + $0x68] sm:$0xf]
        %v277 = vld [vmem:[%s248 + $0x6c] sm:$0xf]
        %v278 = vld [vmem:[%s248 + $0x70] sm:$0xf]
        %v279 = vld [vmem:[%s248 + $0x74] sm:$0xf]
        %v280 = vld [vmem:[%s248 + $0x78] sm:$0xf]
        %v281 = vld [vmem:[%s248 + $0x7c] sm:$0xf]
        %v282 = vld [vmem:[%s1] sm:$0xf]
        %v283 = vld [vmem:[%s1 + $0x4] sm:$0xf]
        %v284 = vld [vmem:[%s1 + $0x8] sm:$0xf]
        %v285 = vld [vmem:[%s1 + $0xc] sm:$0xf]
        %v286 = vld [vmem:[%s1 + $0x10] sm:$0x3]
        %v319 = vunpack.c.l.b16 %v250
        %v320 = vunpack.c.l.b16 %v251
        %v321 = vunpack.c.l.b16 %v252
        %v322 = vunpack.c.l.b16 %v253
        %v323 = vunpack.c.l.b16 %v254
        %v324 = vunpack.c.l.b16 %v255
        %v325 = vunpack.c.l.b16 %v256
        %v326 = vunpack.c.l.b16 %v257
        %v327 = vunpack.c.l.b16 %v258
        %v328 = vunpack.c.l.b16 %v259
        %v329 = vunpack.c.l.b16 %v260
        %v330 = vunpack.c.l.b16 %v261
        %v331 = vunpack.c.l.b16 %v262
        %v332 = vunpack.c.l.b16 %v263
        %v333 = vunpack.c.l.b16 %v264
        %v334 = vunpack.c.l.b16 %v265
        %v335 = vunpack.c.l.b16 %v266
        %v336 = vunpack.c.l.b16 %v267
        %v337 = vunpack.c.l.b16 %v268
        %v338 = vunpack.c.l.b16 %v269
        %v339 = vunpack.c.l.b16 %v270
        %v340 = vunpack.c.l.b16 %v271
        %v341 = vunpack.c.l.b16 %v272
        %v342 = vunpack.c.l.b16 %v273
        %v343 = vunpack.c.l.b16 %v274
        %v344 = vunpack.c.l.b16 %v275
        %v345 = vunpack.c.l.b16 %v276
        %v346 = vunpack.c.l.b16 %v277
        %v347 = vunpack.c.l.b16 %v278
        %v348 = vunpack.c.l.b16 %v279
        %v349 = vunpack.c.l.b16 %v280
        %v350 = vunpack.c.l.b16 %v281
        %v351 = vpack.c.b16 %v320, %v319
        %v352 = vpack.c.b16 %v322, %v321
        %v353 = vpack.c.b16 %v324, %v323
        %v354 = vpack.c.b16 %v326, %v325
        %v355 = vpack.c.b16 %v328, %v327
        %v356 = vpack.c.b16 %v330, %v329
        %v357 = vpack.c.b16 %v332, %v331
        %v358 = vpack.c.b16 %v334, %v333
        %v359 = vpack.c.b16 %v336, %v335
        %v360 = vpack.c.b16 %v338, %v337
        %v361 = vpack.c.b16 %v340, %v339
        %v362 = vpack.c.b16 %v342, %v341
        %v363 = vpack.c.b16 %v344, %v343
        %v364 = vpack.c.b16 %v346, %v345
        %v365 = vpack.c.b16 %v348, %v347
        %v366 = vpack.c.b16 %v350, %v349
        %v372 = vunpack.c.l.b16 %v282
        %v373 = vunpack.c.l.b16 %v283
        %v374 = vunpack.c.l.b16 %v284
        %v375 = vunpack.c.l.b16 %v285
        %v376 = vunpack.c.l.b16 %v286
        %v377 = vpack.c.b16 %v373, %v372
        %v378 = vpack.c.b16 %v375, %v374
        %v379 = vpack.c.b16 %v376, %v376
        %vm382 = vcmask 293888
        %v384 = vsel %vm382, %v351, 0
        %v387 = vsel %vm382, %v352, 0
        %v390 = vsel %vm382, %v353, 0
        %v393 = vsel %vm382, %v354, 0
        %v396 = vsel %vm382, %v355, 0
        %v399 = vsel %vm382, %v356, 0
        %v402 = vsel %vm382, %v357, 0
        %v405 = vsel %vm382, %v358, 0
        %v408 = vsel %vm382, %v359, 0
        %v411 = vsel %vm382, %v360, 0
        %v414 = vsel %vm382, %v361, 0
        %v417 = vsel %vm382, %v362, 0
        %v420 = vsel %vm382, %v363, 0
        %v423 = vsel %vm382, %v364, 0
        %v426 = vsel %vm382, %v365, 0
        %v429 = vsel %vm382, %v366, 0
        %vm431 = vcmask 1041408
        %v433 = vsel %vm431, %v379, 0
        %435 = vmatpush.bf16.msra.mxu0 0
        %436 = vmatpush.bf16.msra.mxu0 0
        %437 = vmatpush.bf16.msra.mxu0 0
        %438 = vmatpush.bf16.msra.mxu0 0
        %439 = vmatpush.bf16.msra.mxu0 0
        %440 = vmatpush.bf16.msra.mxu0 %v433
        %441 = vmatpush.bf16.msra.mxu0 %v378
        %442 = vmatpush.bf16.msra.mxu0 %v377
        %443 = vmatmul.bf16.gmra.mxu0 %v384
        %v444 = vpop.f32.mrf.mxu0
        %v445 = vadd.f32 0.0, %v444
        %v446 = vpop.f32.mrf.mxu0
        %v447 = vadd.f32 0.0, %v446
        %448 = vmatmul.bf16.gmra.mxu0 %v387
        %v449 = vpop.f32.mrf.mxu0
        %v450 = vadd.f32 0.0, %v449
        %v451 = vpop.f32.mrf.mxu0
        %v452 = vadd.f32 0.0, %v451
        %453 = vmatmul.bf16.gmra.mxu0 %v390
        %v454 = vpop.f32.mrf.mxu0
        %v455 = vadd.f32 0.0, %v454
        %v456 = vpop.f32.mrf.mxu0
        %v457 = vadd.f32 0.0, %v456
        %458 = vmatmul.bf16.gmra.mxu0 %v393
        %v459 = vpop.f32.mrf.mxu0
        %v460 = vadd.f32 0.0, %v459
        %v461 = vpop.f32.mrf.mxu0
        %v462 = vadd.f32 0.0, %v461
        %463 = vmatmul.bf16.gmra.mxu0 %v396
        %v464 = vpop.f32.mrf.mxu0
        %v465 = vadd.f32 0.0, %v464
        %v466 = vpop.f32.mrf.mxu0
        %v467 = vadd.f32 0.0, %v466
        %468 = vmatmul.bf16.gmra.mxu0 %v399
        %v469 = vpop.f32.mrf.mxu0
        %v470 = vadd.f32 0.0, %v469
        %v471 = vpop.f32.mrf.mxu0
        %v472 = vadd.f32 0.0, %v471
        %473 = vmatmul.bf16.gmra.mxu0 %v402
        %v474 = vpop.f32.mrf.mxu0
        %v475 = vadd.f32 0.0, %v474
        %v476 = vpop.f32.mrf.mxu0
        %v477 = vadd.f32 0.0, %v476
        %478 = vmatmul.bf16.gmra.mxu0 %v405
        %v479 = vpop.f32.mrf.mxu0
        %v480 = vadd.f32 0.0, %v479
        %v481 = vpop.f32.mrf.mxu0
        %v482 = vadd.f32 0.0, %v481
        %483 = vmatmul.bf16.gmra.mxu0 %v408
        %v484 = vpop.f32.mrf.mxu0
        %v485 = vadd.f32 0.0, %v484
        %v486 = vpop.f32.mrf.mxu0
        %v487 = vadd.f32 0.0, %v486
        %488 = vmatmul.bf16.gmra.mxu0 %v411
        %v489 = vpop.f32.mrf.mxu0
        %v490 = vadd.f32 0.0, %v489
        %v491 = vpop.f32.mrf.mxu0
        %v492 = vadd.f32 0.0, %v491
        %493 = vmatmul.bf16.gmra.mxu0 %v414
        %v494 = vpop.f32.mrf.mxu0
        %v495 = vadd.f32 0.0, %v494
        %v496 = vpop.f32.mrf.mxu0
        %v497 = vadd.f32 0.0, %v496
        %498 = vmatmul.bf16.gmra.mxu0 %v417
        %v499 = vpop.f32.mrf.mxu0
        %v500 = vadd.f32 0.0, %v499
        %v501 = vpop.f32.mrf.mxu0
        %v502 = vadd.f32 0.0, %v501
        %503 = vmatmul.bf16.gmra.mxu0 %v420
        %v504 = vpop.f32.mrf.mxu0
        %v505 = vadd.f32 0.0, %v504
        %v506 = vpop.f32.mrf.mxu0
        %v507 = vadd.f32 0.0, %v506
        %508 = vmatmul.bf16.gmra.mxu0 %v423
        %v509 = vpop.f32.mrf.mxu0
        %v510 = vadd.f32 0.0, %v509
        %v511 = vpop.f32.mrf.mxu0
        %v512 = vadd.f32 0.0, %v511
        %513 = vmatmul.bf16.gmra.mxu0 %v426
        %v514 = vpop.f32.mrf.mxu0
        %v515 = vadd.f32 0.0, %v514
        %v516 = vpop.f32.mrf.mxu0
        %v517 = vadd.f32 0.0, %v516
        %518 = vmatmul.bf16.gmra.mxu0 %v429
        %v519 = vpop.f32.mrf.mxu0
        %v520 = vadd.f32 0.0, %v519
        %v521 = vpop.f32.mrf.mxu0
        %v522 = vadd.f32 0.0, %v521
        %523 = vdwg.mxu0
        %v524 = vld [vmem:[%s2] sm:$0x1]
        %v526 = vperm.slane %v524, 0
        %v528 = vmul.f32 %v445, %v526
        %v529 = vmul.f32 %v447, %v526
        %v530 = vmul.f32 %v450, %v526
        %v531 = vmul.f32 %v452, %v526
        %v532 = vmul.f32 %v455, %v526
        %v533 = vmul.f32 %v457, %v526
        %v534 = vmul.f32 %v460, %v526
        %v535 = vmul.f32 %v462, %v526
        %v536 = vmul.f32 %v465, %v526
        %v537 = vmul.f32 %v467, %v526
        %v538 = vmul.f32 %v470, %v526
        %v539 = vmul.f32 %v472, %v526
        %v540 = vmul.f32 %v475, %v526
        %v541 = vmul.f32 %v477, %v526
        %v542 = vmul.f32 %v480, %v526
        %v543 = vmul.f32 %v482, %v526
        %v544 = vmul.f32 %v485, %v526
        %v545 = vmul.f32 %v487, %v526
        %v546 = vmul.f32 %v490, %v526
        %v547 = vmul.f32 %v492, %v526
        %v548 = vmul.f32 %v495, %v526
        %v549 = vmul.f32 %v497, %v526
        %v550 = vmul.f32 %v500, %v526
        %v551 = vmul.f32 %v502, %v526
        %v552 = vmul.f32 %v505, %v526
        %v553 = vmul.f32 %v507, %v526
        %v554 = vmul.f32 %v510, %v526
        %v555 = vmul.f32 %v512, %v526
        %v556 = vmul.f32 %v515, %v526
        %v557 = vmul.f32 %v517, %v526
        %v558 = vmul.f32 %v520, %v526
        %v559 = vmul.f32 %v522, %v526
        %v560 = vld [vmem:[%s3] sm:$0x1]
        %v562 = vperm.slane %v560, 0
        %v564 = vadd.f32 %v528, %v562
        %v565 = vadd.f32 %v529, %v562
        %v566 = vadd.f32 %v530, %v562
        %v567 = vadd.f32 %v531, %v562
        %v568 = vadd.f32 %v532, %v562
        %v569 = vadd.f32 %v533, %v562
        %v570 = vadd.f32 %v534, %v562
        %v571 = vadd.f32 %v535, %v562
        %v572 = vadd.f32 %v536, %v562
        %v573 = vadd.f32 %v537, %v562
        %v574 = vadd.f32 %v538, %v562
        %v575 = vadd.f32 %v539, %v562
        %v576 = vadd.f32 %v540, %v562
        %v577 = vadd.f32 %v541, %v562
        %v578 = vadd.f32 %v542, %v562
        %v579 = vadd.f32 %v543, %v562
        %v580 = vadd.f32 %v544, %v562
        %v581 = vadd.f32 %v545, %v562
        %v582 = vadd.f32 %v546, %v562
        %v583 = vadd.f32 %v547, %v562
        %v584 = vadd.f32 %v548, %v562
        %v585 = vadd.f32 %v549, %v562
        %v586 = vadd.f32 %v550, %v562
        %v587 = vadd.f32 %v551, %v562
        %v588 = vadd.f32 %v552, %v562
        %v589 = vadd.f32 %v553, %v562
        %v590 = vadd.f32 %v554, %v562
        %v591 = vadd.f32 %v555, %v562
        %v592 = vadd.f32 %v556, %v562
        %v593 = vadd.f32 %v557, %v562
        %v594 = vadd.f32 %v558, %v562
        %v595 = vadd.f32 %v559, %v562
        %v596 = vmax.f32 %v564, 0.0
        %v597 = vmax.f32 %v565, 0.0
        %v598 = vmax.f32 %v566, 0.0
        %v599 = vmax.f32 %v567, 0.0
        %v600 = vmax.f32 %v568, 0.0
        %v601 = vmax.f32 %v569, 0.0
        %v602 = vmax.f32 %v570, 0.0
        %v603 = vmax.f32 %v571, 0.0
        %v604 = vmax.f32 %v572, 0.0
        %v605 = vmax.f32 %v573, 0.0
        %v606 = vmax.f32 %v574, 0.0
        %v607 = vmax.f32 %v575, 0.0
        %v608 = vmax.f32 %v576, 0.0
        %v609 = vmax.f32 %v577, 0.0
        %v610 = vmax.f32 %v578, 0.0
        %v611 = vmax.f32 %v579, 0.0
        %v612 = vmax.f32 %v580, 0.0
        %v613 = vmax.f32 %v581, 0.0
        %v614 = vmax.f32 %v582, 0.0
        %v615 = vmax.f32 %v583, 0.0
        %v616 = vmax.f32 %v584, 0.0
        %v617 = vmax.f32 %v585, 0.0
        %v618 = vmax.f32 %v586, 0.0
        %v619 = vmax.f32 %v587, 0.0
        %v620 = vmax.f32 %v588, 0.0
        %v621 = vmax.f32 %v589, 0.0
        %v622 = vmax.f32 %v590, 0.0
        %v623 = vmax.f32 %v591, 0.0
        %v624 = vmax.f32 %v592, 0.0
        %v625 = vmax.f32 %v593, 0.0
        %v626 = vmax.f32 %v594, 0.0
        %v627 = vmax.f32 %v595, 0.0
        %v628 = vadd.f32 %v596, %v597
        %v629 = vadd.f32 %v628, %v598
        %v630 = vadd.f32 %v629, %v599
        %v631 = vadd.f32 %v630, %v600
        %v632 = vadd.f32 %v631, %v601
        %v633 = vadd.f32 %v632, %v602
        %v634 = vadd.f32 %v633, %v603
        %v635 = vadd.f32 %v634, %v604
        %v636 = vadd.f32 %v635, %v605
        %v637 = vadd.f32 %v636, %v606
        %v638 = vadd.f32 %v637, %v607
        %v639 = vadd.f32 %v638, %v608
        %v640 = vadd.f32 %v639, %v609
        %v641 = vadd.f32 %v640, %v610
        %v642 = vadd.f32 %v641, %v611
        %v643 = vadd.f32 %v642, %v612
        %v644 = vadd.f32 %v643, %v613
        %v645 = vadd.f32 %v644, %v614
        %v646 = vadd.f32 %v645, %v615
        %v647 = vadd.f32 %v646, %v616
        %v648 = vadd.f32 %v647, %v617
        %v649 = vadd.f32 %v648, %v618
        %v650 = vadd.f32 %v649, %v619
        %v651 = vadd.f32 %v650, %v620
        %v652 = vadd.f32 %v651, %v621
        %v653 = vadd.f32 %v652, %v622
        %v654 = vadd.f32 %v653, %v623
        %v655 = vadd.f32 %v654, %v624
        %v656 = vadd.f32 %v655, %v625
        %v657 = vadd.f32 %v656, %v626
        %v658 = vadd.f32 %v657, %v627
        %v659 = vrot.slane %v658, 4
        %v660 = vadd.f32 %v658, %v659
        %v661 = vrot.slane %v660, 2
        %v662 = vadd.f32 %v660, %v661
        %v663 = vrot.slane %v662, 1
        %v664 = vadd.f32 %v662, %v663
        %v665 = vmul.f32 %v664, 0.00390625
        %v666 = vpack.c.bf16 %v665, %v665
        %v667 = vld [vmem:[%s4] sm:$0xf]
        %v668 = vld [vmem:[%s4 + $0x4] sm:$0xf]
        %v669 = vld [vmem:[%s4 + $0x8] sm:$0xf]
        %v670 = vld [vmem:[%s4 + $0xc] sm:$0xf]
        %v671 = vld [vmem:[%s4 + $0x10] sm:$0xf]
        %v672 = vld [vmem:[%s4 + $0x14] sm:$0xf]
        %v673 = vld [vmem:[%s4 + $0x18] sm:$0xf]
        %v674 = vld [vmem:[%s4 + $0x1c] sm:$0xf]
        %v675 = vld [vmem:[%s4 + $0x20] sm:$0xf]
        %v676 = vld [vmem:[%s4 + $0x24] sm:$0xf]
        %v677 = vld [vmem:[%s4 + $0x28] sm:$0xf]
        %v678 = vld [vmem:[%s4 + $0x2c] sm:$0xf]
        %v679 = vld [vmem:[%s4 + $0x30] sm:$0xf]
        %v680 = vld [vmem:[%s4 + $0x34] sm:$0xf]
        %v681 = vld [vmem:[%s4 + $0x38] sm:$0xf]
        %v682 = vld [vmem:[%s4 + $0x3c] sm:$0xf]
        %v683 = vld [vmem:[%s5] sm:$0x1]
        %v700 = vunpack.c.l.b16 %v667
        %v701 = vunpack.c.l.b16 %v668
        %v702 = vunpack.c.l.b16 %v669
        %v703 = vunpack.c.l.b16 %v670
        %v704 = vunpack.c.l.b16 %v671
        %v705 = vunpack.c.l.b16 %v672
        %v706 = vunpack.c.l.b16 %v673
        %v707 = vunpack.c.l.b16 %v674
        %v708 = vunpack.c.l.b16 %v675
        %v709 = vunpack.c.l.b16 %v676
        %v710 = vunpack.c.l.b16 %v677
        %v711 = vunpack.c.l.b16 %v678
        %v712 = vunpack.c.l.b16 %v679
        %v713 = vunpack.c.l.b16 %v680
        %v714 = vunpack.c.l.b16 %v681
        %v715 = vunpack.c.l.b16 %v682
        %v716 = vpack.c.b16 %v701, %v700
        %v717 = vpack.c.b16 %v703, %v702
        %v718 = vpack.c.b16 %v705, %v704
        %v719 = vpack.c.b16 %v707, %v706
        %v720 = vpack.c.b16 %v709, %v708
        %v721 = vpack.c.b16 %v711, %v710
        %v722 = vpack.c.b16 %v713, %v712
        %v723 = vpack.c.b16 %v715, %v714
        %732 = vmatpush.bf16.msra.mxu0 %v723
        %733 = vmatpush.bf16.msra.mxu0 %v722
        %734 = vmatpush.bf16.msra.mxu0 %v721
        %735 = vmatpush.bf16.msra.mxu0 %v720
        %736 = vmatpush.bf16.msra.mxu0 %v719
        %737 = vmatpush.bf16.msra.mxu0 %v718
        %738 = vmatpush.bf16.msra.mxu0 %v717
        %739 = vmatpush.bf16.msra.mxu0 %v716
        %740 = vmatmul.bf16.gmra.mxu0 %v666
        %v741 = vpop.f32.mrf.mxu0
        %v742 = vadd.f32 %v683, %v741
        %v743 = vpop.f32.mrf.mxu0
        %744 = vdwg.mxu0
        %745 = vst [vmem:[%s243] sm:$0x1] %v742
        %s746 = sand.u32 %s159, 1
        %s747 = scalar_lea.sflag [#allocation3], %s746
        %s748 = sand.u32 %s159, 1
        %s749 = scalar_lea.vmem [#allocation2], %s748
        // Predicated region
        $region45: #{fused_two_stream_forward.1} parent=43 // pred_check
          %p750 = pneg %p169
        $region46: #{fused_two_stream_forward.1} parent=43 // pred_check_branch
          %752 = sbr.rel (%p750) target = $region48
        $region47: #{fused_two_stream_forward.1} parent=43 // pred_region
          %754 = vsyncadd %s747, 0
          %s755 = scalar_lea.hbm %s6, %s20
          %s757 = sshll.u32 %s749, 4
          %s758 = int_to_ptr.vmem [resolvable:$true] %s757
          %s759 = sshll.u32 %s755, 4
          %s760 = int_to_ptr.hbm [resolvable:$true] %s759
          %762 = dma.vmem_to_hbm [thread:$0]  %s758, 16, %s760, %s747
        $region48: #{fused_two_stream_forward.1} parent=43 // pred_fallthru
          _
      $region44: #{fused_two_stream_forward.1} parent=5 // pred_fallthru
        _
      %p763 = scmp.le.s32.totalorder 2, %s15
      // Predicated region
      $region49: #{fused_two_stream_forward.1} parent=5 // pred_check
        %p764 = pneg %p763
      $region50: #{fused_two_stream_forward.1} parent=5 // pred_check_branch
        %766 = sbr.rel (%p764) target = $region52
      $region51: #{fused_two_stream_forward.1} parent=5 // pred_region
        %s767 = ssub.s32 %s15, 2
        // Predicated region
        $region53: #{fused_two_stream_forward.1} parent=51 // pred_check
          %p768 = pneg %p175
        $region54: #{fused_two_stream_forward.1} parent=51 // pred_check_branch
          %770 = sbr.rel (%p768) target = $region56
        $region55: #{fused_two_stream_forward.1} parent=51 // pred_region
          %s771 = sand.u32 %s160, 1
          %s772 = scalar_lea.sflag [#allocation3], %s771
          %s773 = sand.u32 %s160, 1
          %s774 = scalar_lea.vmem [#allocation2], %s773
          %776 = dma.done %s772, 16
        $region56: #{fused_two_stream_forward.1} parent=51 // pred_fallthru
          _
      $region52: #{fused_two_stream_forward.1} parent=5 // pred_fallthru
        _
    $region6: #{fused_two_stream_forward.1} parent=1 // loop_footer
      %s19 = sadd.s32 1, %s15
    $region7: #{fused_two_stream_forward.1} parent=1 // loop_footer_branch
      %14 = sbr.rel target = $region3
    $region8: #{fused_two_stream_forward.1} parent=1 // loop_exit
      _
    %777 = vsyncpa [#allocation3], 1
    %s778 = scalar_lea.sflag [#allocation3], 1
    %779 = vsyncpa %s778, 1

</llo_original>
